<compile_context>
chip_gen: v6e
topology: v6e:2x2x1
jax: 0.10.0
libtpu: 0.0.40
codegen_flags: <defaults>
</compile_context>

<pallas_src>
import functools

import jax
import jax.numpy as jnp
from jax.experimental import pallas as pl
from jax.experimental.pallas import tpu as pltpu

LANE = 128      # lane width: last block dim must be a multiple of this
SUBLANE = 8     # f32 sublane packing: second-to-last block dim multiple


def _round_up(x, m):
    return ((x + m - 1) // m) * m


def _cdiv(a, b):
    return (a + b - 1) // b


@functools.lru_cache(maxsize=1)
def _vmem_config():
    """Returns (tiling_budget_bytes, vmem_limit_bytes), generation-aware."""
    phys = 64 * 1024 * 1024                      # conservative default (v7x/core)
    try:
        phys = int(pltpu.get_tpu_info().vmem_capacity_bytes)
    except Exception:
        pass
    limit = min(phys * 3 // 4, 96 * 1024 * 1024)  # ~96 MiB v5e/v6e, ~48 MiB v7x
    budget = limit - 4 * 1024 * 1024              # headroom for compiler scratch
    return budget, limit


def _choose_tm(m_rows, n_pack, itemsize, budget):
    """Largest row tile for the resident-W path, or None -> use tiled path."""
    w_bytes = 2 * n_pack * n_pack * itemsize      # resident W (double-buffered)
    row_bytes = 2 * 2 * n_pack * itemsize         # x + out tiles, double-buffered
    avail = budget - w_bytes
    if avail < row_bytes * SUBLANE:
        return None
    tm = min((avail // row_bytes) // SUBLANE * SUBLANE, 1024)
    if m_rows >= 2 * SUBLANE:
        # >=2 grid steps (megacore sharding on v7x + DMA/compute overlap),
        # targeting ~4 steps on large M, but never below 256-row tiles.
        four_way = max(256, _round_up(_cdiv(m_rows, 4), SUBLANE))
        two_way = _round_up(_cdiv(m_rows, 2), SUBLANE)
        tm = min(tm, four_way, two_way)
    tm = min(tm, _round_up(m_rows, SUBLANE))
    return max(tm, SUBLANE)


def _rotation_kernel(x_ref, w_ref, o_ref):
    # (TM, K) @ (K, K) on the MXU with f32 accumulation; W stays resident.
    o_ref[...] = jnp.dot(
        x_ref[...], w_ref[...], preferred_element_type=jnp.float32
    ).astype(o_ref.dtype)


def _rotation_tiled_kernel(x_ref, w_ref, o_ref, acc_ref):
    @pl.when(pl.program_id(2) == 0)
    def _init():
        acc_ref[...] = jnp.zeros_like(acc_ref)

    acc_ref[...] += jnp.dot(
        x_ref[...], w_ref[...], preferred_element_type=jnp.float32)

    @pl.when(pl.program_id(2) == pl.num_programs(2) - 1)
    def _finalize():
        o_ref[...] = acc_ref[...].astype(o_ref.dtype)


def _matmul_resident(x2d, w, tm, vmem_limit):
    """x2d: (M, K), w: (K, N) resident in VMEM, grid over M only."""
    m, k = x2d.shape
    n = w.shape[1]
    itemsize = jnp.dtype(x2d.dtype).itemsize
    cost = pl.CostEstimate(
        flops=2 * m * k * n,
        transcendentals=0,
        bytes_accessed=(m * k + k * n + m * n) * itemsize)
    return pl.pallas_call(
        _rotation_kernel,
        out_shape=jax.ShapeDtypeStruct((m, n), x2d.dtype),
        grid=(_cdiv(m, tm),),
        in_specs=[
            pl.BlockSpec((tm, k), lambda i: (i, 0)),
            pl.BlockSpec((k, n), lambda i: (0, 0)),   # constant index: DMA'd once
        ],
        out_specs=pl.BlockSpec((tm, n), lambda i: (i, 0)),
        compiler_params=pltpu.CompilerParams(
            dimension_semantics=("parallel",),
            vmem_limit_bytes=vmem_limit),
        cost_estimate=cost,
    )(x2d, w)


def _matmul_tiled(x2d, w, vmem_limit):
    """Fallback for embed_dim too large for a resident W: (M,N,K) tiling."""
    m, k = x2d.shape
    n = w.shape[1]
    tm = min(512, _round_up(m, SUBLANE))
    tn = 256 if n % 256 == 0 else 128
    tk = 256 if k % 256 == 0 else 128
    itemsize = jnp.dtype(x2d.dtype).itemsize
    cost = pl.CostEstimate(
        flops=2 * m * k * n,
        transcendentals=0,
        bytes_accessed=(m * k * (n // tn) + k * n * _cdiv(m, tm) + m * n) * itemsize)
    return pl.pallas_call(
        _rotation_tiled_kernel,
        out_shape=jax.ShapeDtypeStruct((m, n), x2d.dtype),
        grid=(_cdiv(m, tm), n // tn, k // tk),
        in_specs=[
            pl.BlockSpec((tm, tk), lambda i, j, l: (i, l)),
            pl.BlockSpec((tk, tn), lambda i, j, l: (l, j)),
        ],
        out_specs=pl.BlockSpec((tm, tn), lambda i, j, l: (i, j)),
        scratch_shapes=[pltpu.VMEM((tm, tn), jnp.float32)],
        compiler_params=pltpu.CompilerParams(
            dimension_semantics=("parallel", "parallel", "arbitrary"),
            vmem_limit_bytes=vmem_limit),
        cost_estimate=cost,
    )(x2d, w)


@functools.partial(jax.jit, static_argnames=("n", "mode", "pack", "n_pack"))
def _rotation_apply(x, w, *, n, mode, pack, n_pack):
    """y = x @ W_logical, where `w` is the packed/padded physical weight."""
    orig_shape = x.shape
    x2d = x.reshape(-1, n).astype(w.dtype)     # free contiguous reshape under jit
    m = x2d.shape[0]

    if mode == "pack":
        # (M, n) -> (M/p, p*n): contiguous reshape, no data movement.
        if m % pack:
            x2d = jnp.pad(x2d, ((0, pack - m % pack), (0, 0)))
        xp = x2d.reshape(-1, n_pack)
    elif mode == "pad":
        xp = jnp.pad(x2d, ((0, 0), (0, n_pack - n)))
    else:  # "full"
        xp = x2d

    m_rows = xp.shape[0]
    if m_rows % SUBLANE:
        # Tiny (<8-row) tail pad so the sublane block dim never exceeds the array.
        xp = jnp.pad(xp, ((0, SUBLANE - m_rows % SUBLANE), (0, 0)))
        m_rows = xp.shape[0]

    itemsize = jnp.dtype(w.dtype).itemsize
    budget, limit = _vmem_config()
    tm = _choose_tm(m_rows, n_pack, itemsize, budget)
    if tm is not None:
        yp = _matmul_resident(xp, w, tm, limit)
    else:
        yp = _matmul_tiled(xp, w, limit)

    if mode == "pack":
        y2d = yp.reshape(-1, n)                # free reshape back to logical rows
        if y2d.shape[0] != m:
            y2d = y2d[:m]
    elif mode == "pad":
        y2d = yp[:m, :n]
    else:
        y2d = yp if yp.shape[0] == m else yp[:m]
    return y2d.reshape(orig_shape)


class RotationPallas:
    """JAX/Pallas equivalent of the PyTorch `Rotation` module.

    forward(x) = x @ W, inverse(x) = x @ W.T, W orthogonal (embed_dim, embed_dim).
    """

    def __init__(self, embed_dim, key, compute_dtype=jnp.float32):
        # compute_dtype=jnp.bfloat16 halves HBM traffic on this memory-bound op
        # (MXU accumulation stays f32); default f32 matches the PyTorch module.
        self.embed_dim = int(embed_dim)
        self.compute_dtype = compute_dtype

        # Orthogonal init (mirrors torch.nn.init.orthogonal_): QR of a Gaussian,
        # sign-fixed via where() so a zero diagonal entry can't zero a column.
        a = jax.random.normal(key, (embed_dim, embed_dim), dtype=jnp.float32)
        q, r = jnp.linalg.qr(a)
        d = jnp.diag(r)
        q = q * jnp.where(d >= 0, 1.0, -1.0)[None, :]
        self.weight = q.astype(jnp.float32)            # (n, n), orthogonal

        n = self.embed_dim
        w = self.weight.astype(compute_dtype)
        if n % LANE == 0:
            # Already lane-aligned: use W as-is.
            self._mode, self._pack, self._n_pack = "full", 1, n
            self._w_fwd, self._w_inv = w, w.T
        elif LANE % n == 0:
            # Block-diagonal packing: [r0|..|r_{p-1}] @ kron(I_p, W)
            #   = [r0@W | .. | r_{p-1}@W], exact, lane-dense, no traffic inflation.
            p = LANE // n
            eye = jnp.eye(p, dtype=compute_dtype)
            self._mode, self._pack, self._n_pack = "pack", p, LANE
            self._w_fwd = jnp.kron(eye, w)
            self._w_inv = jnp.kron(eye, w.T)
        else:
            # General fallback: zero-pad lanes to a multiple of 128.
            # [x, 0] @ [[W, 0], [0, 0]] = [x @ W, 0].
            np_ = _round_up(n, LANE)
            z = jnp.zeros((np_, np_), dtype=compute_dtype)
            self._mode, self._pack, self._n_pack = "pad", 1, np_
            self._w_fwd = z.at[:n, :n].set(w)
            self._w_inv = z.at[:n, :n].set(w.T)

    def _apply(self, x, w_mat):
        assert x.shape[-1] == self.embed_dim, "last dim must equal embed_dim"
        return _rotation_apply(x, w_mat, n=self.embed_dim, mode=self._mode,
                               pack=self._pack, n_pack=self._n_pack)

    def forward(self, x):
        return self._apply(x, self._w_fwd)

    def __call__(self, x):
        return self.forward(x)

    def inverse(self, x):
        return self._apply(x, self._w_inv)


if __name__ == "__main__":
    key = jax.random.PRNGKey(0)
    k_w, k_x = jax.random.split(key)

    embed_dim = 32
    batch, seq = 2, 8   # M = batch*seq = 16 rows, packed 4-per-row to (4, 128)

    rot = RotationPallas(embed_dim, k_w)
    x = jax.random.normal(k_x, (batch, seq, embed_dim), dtype=jnp.float32)

    y = jax.block_until_ready(rot.forward(x))

    # Sanity checks against plain-JAX reference (same math as the PyTorch module).
    y_ref = x @ rot.weight
    assert y.shape == x.shape
    assert y.dtype == x.dtype
    assert jnp.allclose(y, y_ref, atol=1e-5, rtol=1e-5)

    # Orthogonality sanity: inverse(forward(x)) ≈ x
    x_back = jax.block_until_ready(rot.inverse(y))
    assert jnp.allclose(x_back, x, atol=1e-4, rtol=1e-4)

    print("KERNEL_OK")
</pallas_src>

<mosaic_0001>
module attributes {stable_mosaic.version = 11 : i64} {
  func.func @_rotation_kernel(%arg0: i32, %arg1: memref<8x128xf32, #tpu.memory_space<vmem>>, %arg2: memref<128x128xf32, #tpu.memory_space<vmem>>, %arg3: memref<8x128xf32, #tpu.memory_space<vmem>>) attributes {dimension_semantics = [#tpu.dimension_semantics<parallel>], iteration_bounds = array<i64: 1>, scalar_prefetch = 0 : i64, scratch_operands = 0 : i64, tpu.core_type = #tpu.core_type<tc>, window_params = [{transform_indices = @transform_0, window_bounds = array<i64: 8, 128>}, {pipeline_mode = #tpu.pipeline_mode<synchronous>, transform_indices = @transform_1, window_bounds = array<i64: 128, 128>}, {transform_indices = @transform_2, window_bounds = array<i64: 8, 128>}]} {
    %c0 = arith.constant 0 : index
    %c0_0 = arith.constant 0 : index
    %0 = vector.load %arg1[%c0, %c0_0] : memref<8x128xf32, #tpu.memory_space<vmem>>, vector<8x128xf32>
    %c0_1 = arith.constant 0 : index
    %c0_2 = arith.constant 0 : index
    %1 = vector.load %arg2[%c0_1, %c0_2] : memref<128x128xf32, #tpu.memory_space<vmem>>, vector<128x128xf32>
    %cst = arith.constant dense<0.000000e+00> : vector<8x128xf32>
    %2 = tpu.matmul %0, %1, %cst {dimension_numbers = #tpu.dot_dimension_numbers<[1], [0], [0], [1], [0, 0, 1, 1], [], []>} : vector<8x128xf32>, vector<128x128xf32>, vector<8x128xf32> -> vector<8x128xf32>
    %c0_3 = arith.constant 0 : index
    %c0_4 = arith.constant 0 : index
    %3 = vector.load %arg3[%c0_3, %c0_4] : memref<8x128xf32, #tpu.memory_space<vmem>>, vector<8x128xf32>
    tpu.vector_store %arg3[%c0_3, %c0_4], %2 {strides = array<i32>} : memref<8x128xf32, #tpu.memory_space<vmem>>, vector<8x128xf32>,
    return
  }
  func.func @transform_0(%arg0: i32) -> (i32, i32) {
    %c0_i32 = arith.constant 0 : i32
    %c0_i32_0 = arith.constant 0 : i32
    return %arg0, %c0_i32 : i32, i32
  }
  func.func @transform_1(%arg0: i32) -> (i32, i32) {
    %c0_i32 = arith.constant 0 : i32
    %c0_i32_0 = arith.constant 0 : i32
    %c0_i32_1 = arith.constant 0 : i32
    return %c0_i32, %c0_i32_0 : i32, i32
  }
  func.func @transform_2(%arg0: i32) -> (i32, i32) {
    %c0_i32 = arith.constant 0 : i32
    %c0_i32_0 = arith.constant 0 : i32
    return %arg0, %c0_i32 : i32, i32
  }
}

</mosaic_0001>

<llo_original>
// kernel: _rotation_apply.1
$region0: #{_rotation_apply.1}
  #allocation0 [shape = 'u32[]', space=smem, size = 0x4, offset = 0x4, fixed_abs, tag = 'smem constant byte address 0x4 - core index']
  #allocation1 [shape = 'u32[144,128]{1,0:T(1,128)}', space=vmem, size = 0x12000, scoped, tag = 'internal scratch']
  %s0 = inlined_call_operand.vmem [shape: f32[8,128], index: 0, kind: input, shape index: {}]
  %s1 = inlined_call_operand.hbm [shape: f32[128,128], index: 1, kind: input, shape index: {}]
  %s2 = inlined_call_operand.vmem [shape: f32[8,128], index: 2, kind: output, shape index: {}]
  %s3 = sld [smem:[#allocation0]]
  $region22: #{_rotation_apply.1} parent=0
    _
  %s5 = ssub.s32 1, %s3
  %s6 = scalar_select 0, %s5, %s3
  $region1: #{_rotation_apply.1} parent=0
    #allocation2 [shape = 'u8[65536]{0}', space=vmem, size = 0x10000, scoped, tag = 'input window, operand 1, single buffered']
    #allocation3 [shape = 's32[1]{0}', space=sflag, size = 0x4, scoped, tag = 'scoped memory for _rotation_apply.1']
    %7 = vsyncpa [#allocation3], 0
    // Predicated region
    $region2: #{_rotation_apply.1} parent=1 // pred_check
      _
    $region3: #{_rotation_apply.1} parent=1 // pred_check_branch
      %9 = sbr.rel (0) target = $region5
    $region4: #{_rotation_apply.1} parent=1 // pred_region
      _
    $region5: #{_rotation_apply.1} parent=1 // pred_fallthru
      _
    // Predicated region
    $region6: #{_rotation_apply.1} parent=1 // pred_check
      _
    $region7: #{_rotation_apply.1} parent=1 // pred_check_branch
      %11 = sbr.rel (0) target = $region9
    $region8: #{_rotation_apply.1} parent=1 // pred_region
      %s13 = ssub.s32 2048, 2048
      %14 = vsyncadd [#allocation3], %s13
      %s15 = sshll.u32 [#allocation2], 4
      %s16 = int_to_ptr.vmem [resolvable:$true] %s15
      %21 = dma.hbm_to_vmem [thread:$0]  %s1, 2048, %s16, [#allocation3], 128, 128, 8
    $region9: #{_rotation_apply.1} parent=1 // pred_fallthru
      _
    // Predicated region
    $region10: #{_rotation_apply.1} parent=1 // pred_check
      _
    $region11: #{_rotation_apply.1} parent=1 // pred_check_branch
      %23 = sbr.rel (0) target = $region13
    $region12: #{_rotation_apply.1} parent=1 // pred_region
      %24 = dma.done [#allocation3], 2048
    $region13: #{_rotation_apply.1} parent=1 // pred_fallthru
      _
    %v25 = vld [vmem:[%s0] sm:$0xff]
    %v26 = vld [vmem:[#allocation2] sm:$0xff]
    %v27 = vld [vmem:[#allocation2 + $0x8] sm:$0xff]
    %v28 = vld [vmem:[#allocation2 + $0x10] sm:$0xff]
    %v29 = vld [vmem:[#allocation2 + $0x18] sm:$0xff]
    %v30 = vld [vmem:[#allocation2 + $0x20] sm:$0xff]
    %v31 = vld [vmem:[#allocation2 + $0x28] sm:$0xff]
    %v32 = vld [vmem:[#allocation2 + $0x30] sm:$0xff]
    %v33 = vld [vmem:[#allocation2 + $0x38] sm:$0xff]
    %v34 = vld [vmem:[#allocation2 + $0x40] sm:$0xff]
    %v35 = vld [vmem:[#allocation2 + $0x48] sm:$0xff]
    %v36 = vld [vmem:[#allocation2 + $0x50] sm:$0xff]
    %v37 = vld [vmem:[#allocation2 + $0x58] sm:$0xff]
    %v38 = vld [vmem:[#allocation2 + $0x60] sm:$0xff]
    %v39 = vld [vmem:[#allocation2 + $0x68] sm:$0xff]
    %v40 = vld [vmem:[#allocation2 + $0x70] sm:$0xff]
    %v41 = vld [vmem:[#allocation2 + $0x78] sm:$0xff]
    %42 = vmatprep.subr.mxu0 0.0
    %43 = vmatpush1.msra.mxu0 %v41
    %44 = vmatprep.subr.mxu0 0.0
    %45 = vmatpush1.msra.mxu0 %v40
    %46 = vmatprep.subr.mxu0 0.0
    %47 = vmatpush1.msra.mxu0 %v39
    %48 = vmatprep.subr.mxu0 0.0
    %49 = vmatpush1.msra.mxu0 %v38
    %50 = vmatprep.subr.mxu0 0.0
    %51 = vmatpush1.msra.mxu0 %v37
    %52 = vmatprep.subr.mxu0 0.0
    %53 = vmatpush1.msra.mxu0 %v36
    %54 = vmatprep.subr.mxu0 0.0
    %55 = vmatpush1.msra.mxu0 %v35
    %56 = vmatprep.subr.mxu0 0.0
    %57 = vmatpush1.msra.mxu0 %v34
    %58 = vmatprep.subr.mxu0 0.0
    %59 = vmatpush1.msra.mxu0 %v33
    %60 = vmatprep.subr.mxu0 0.0
    %61 = vmatpush1.msra.mxu0 %v32
    %62 = vmatprep.subr.mxu0 0.0
    %63 = vmatpush1.msra.mxu0 %v31
    %64 = vmatprep.subr.mxu0 0.0
    %65 = vmatpush1.msra.mxu0 %v30
    %66 = vmatprep.subr.mxu0 0.0
    %67 = vmatpush1.msra.mxu0 %v29
    %68 = vmatprep.subr.mxu0 0.0
    %69 = vmatpush1.msra.mxu0 %v28
    %70 = vmatprep.subr.mxu0 0.0
    %71 = vmatpush1.msra.mxu0 %v27
    %72 = vmatprep.subr.mxu0 0.0
    %73 = vmatpush1.msra.mxu0 %v26
    %74 = vmatprep.subr.mxu0 0.0
    %75 = vmatpush2.msra.mxu0 0.0
    %76 = vmatprep.subr.mxu0 0.0
    %77 = vmatpush2.msra.mxu0 0.0
    %78 = vmatprep.subr.mxu0 0.0
    %79 = vmatpush2.msra.mxu0 0.0
    %80 = vmatprep.subr.mxu0 0.0
    %81 = vmatpush2.msra.mxu0 0.0
    %82 = vmatprep.subr.mxu0 0.0
    %83 = vmatpush2.msra.mxu0 0.0
    %84 = vmatprep.subr.mxu0 0.0
    %85 = vmatpush2.msra.mxu0 0.0
    %86 = vmatprep.subr.mxu0 0.0
    %87 = vmatpush2.msra.mxu0 0.0
    %88 = vmatprep.subr.mxu0 0.0
    %89 = vmatpush2.msra.mxu0 0.0
    %90 = vmatprep.subr.mxu0 0.0
    %91 = vmatpush2.msra.mxu0 0.0
    %92 = vmatprep.subr.mxu0 0.0
    %93 = vmatpush2.msra.mxu0 0.0
    %94 = vmatprep.subr.mxu0 0.0
    %95 = vmatpush2.msra.mxu0 0.0
    %96 = vmatprep.subr.mxu0 0.0
    %97 = vmatpush2.msra.mxu0 0.0
    %98 = vmatprep.subr.mxu0 0.0
    %99 = vmatpush2.msra.mxu0 0.0
    %100 = vmatprep.subr.mxu0 0.0
    %101 = vmatpush2.msra.mxu0 0.0
    %102 = vmatprep.subr.mxu0 0.0
    %103 = vmatpush2.msra.mxu0 0.0
    %104 = vmatprep.subr.mxu0 0.0
    %105 = vmatpush2.msra.mxu0 0.0
    %106 = vmatprep.mubr.f32.mxu0 0.0
    %107 = vmatmul.mubr.f32.gmra.mxu0 %v25
    %v108 = vpop.f32.mrf.mxu0
    %v109 = vadd.f32 0.0, %v108
    %v110 = vpop.f32.mrf.mxu0
    %111 = vdwg.mxu0
    %112 = vst [vmem:[%s2] sm:$0xff] %v109
    // Predicated region
    $region14: #{_rotation_apply.1} parent=1 // pred_check
      _
    $region15: #{_rotation_apply.1} parent=1 // pred_check_branch
      %114 = sbr.rel (0) target = $region17
    $region16: #{_rotation_apply.1} parent=1 // pred_region
      _
    $region17: #{_rotation_apply.1} parent=1 // pred_fallthru
      _
    // Predicated region
    $region18: #{_rotation_apply.1} parent=1 // pred_check
      _
    $region19: #{_rotation_apply.1} parent=1 // pred_check_branch
      %116 = sbr.rel (0) target = $region21
    $region20: #{_rotation_apply.1} parent=1 // pred_region
      _
    $region21: #{_rotation_apply.1} parent=1 // pred_fallthru
      _
    %117 = vsyncpa [#allocation3], 1

</llo_original>
